<compile_context>
chip_gen: v7x
topology: tpu7x:2x2x1
jax: 0.10.0
libtpu: 0.0.40
codegen_flags: <defaults>
</compile_context>

<pallas_src>
import functools
import math

import jax
import jax.numpy as jnp
from jax.experimental import pallas as pl
from jax.experimental.pallas import tpu as pltpu


def _attn_decoder_kernel(n_layers, H, approx_softmax,
                         # scalar prefetch (SMEM)
                         idx_ref,
                         # inputs
                         emb_hbm_ref, hidden_ref, enc_ref,
                         w_attn_ref, b_attn_ref,
                         w_comb_ref, b_comb_ref,
                         w_gx_ref, w_gh_ref, b_gx_ref, b_gh_ref,
                         w_out_ref, b_out_ref,
                         # outputs
                         logp_ref, newh_ref, aw_ref,
                         # scratch
                         emb_buf, h_carry, emb_sem):
    f32 = jnp.float32
    wdt = w_attn_ref.dtype                      # weight storage dtype (f32 or bf16)
    t = pl.program_id(0)

    # --- embedding row gather: DMA exactly one (1,H) row from the HBM table ---
    # (token id was clamped in the wrapper; DMA bounds checks would fault on OOB)
    row_cp = pltpu.make_async_copy(
        emb_hbm_ref.at[pl.ds(idx_ref[t], 1), :], emb_buf, emb_sem)
    row_cp.start()

    # --- hidden state carried across grid steps in VMEM scratch ---
    @pl.when(t == 0)
    def _():
        h_carry[...] = hidden_ref[...].astype(f32)
    h = h_carry[...]                            # (1, H) f32

    row_cp.wait()
    emb = emb_buf[...]                          # (1, H) wdt; nn.Dropout = identity (eval)

    # --- attn_weights = softmax(attn(cat(embedded, hidden))) : two dots, no concat ---
    logits_a = (jnp.dot(emb, w_attn_ref[0:H, :], preferred_element_type=f32)
                + jnp.dot(h.astype(wdt), w_attn_ref[H:2 * H, :],
                          preferred_element_type=f32)
                + b_attn_ref[...])              # (1, L)
    m = jnp.max(logits_a, axis=1, keepdims=True)
    e = jnp.exp(logits_a - m)
    s = jnp.sum(e, axis=1, keepdims=True)
    if approx_softmax:
        aw = e * pl.reciprocal(s, approx=True)  # EUP slot (otherwise idle here)
    else:
        aw = e / s                              # exact path for parity testing
    aw_ref[0] = aw

    # --- attn_applied = bmm(attn_weights, encoder_outputs) ---
    attn_applied = jnp.dot(aw, enc_ref[...].astype(f32),
                           preferred_element_type=f32)          # (1, H)

    # --- output = attn_combine(cat(embedded, attn_applied)) : two dots, no concat ---
    output = (jnp.dot(emb, w_comb_ref[0:H, :], preferred_element_type=f32)
              + jnp.dot(attn_applied.astype(wdt), w_comb_ref[H:2 * H, :],
                        preferred_element_type=f32)
              + b_comb_ref[...])                                 # (1, H)

    # --- GRU: x@(H,3H) + h@(H,3H), columns [r | z | n] (no zero padding) ---
    def gru_step(carry):
        out_prev, h_prev = carry
        x = jnp.maximum(out_prev, 0.0)                           # F.relu
        gx = (jnp.dot(x.astype(wdt), w_gx_ref[...],
                      preferred_element_type=f32) + b_gx_ref[...])   # (1, 3H)
        gh = (jnp.dot(h_prev.astype(wdt), w_gh_ref[...],
                      preferred_element_type=f32) + b_gh_ref[...])   # (1, 3H)
        r = jax.nn.sigmoid(gx[:, 0:H] + gh[:, 0:H])
        z = jax.nn.sigmoid(gx[:, H:2 * H] + gh[:, H:2 * H])
        n = jnp.tanh(gx[:, 2 * H:3 * H] + r * gh[:, 2 * H:3 * H])
        h_new = (1.0 - z) * n + z * h_prev                       # PyTorch GRU update
        return (h_new, h_new)

    if n_layers == 1:
        output, h = gru_step((output, h))
    else:
        output, h = jax.lax.fori_loop(0, n_layers, lambda _, c: gru_step(c),
                                      (output, h), unroll=True)

    h_carry[...] = h
    newh_ref[...] = h

    # --- output = log_softmax(out(output)) (exact log path) ---
    logits = (jnp.dot(output.astype(wdt), w_out_ref[...],
                      preferred_element_type=f32)
              + b_out_ref[...])                                  # (1, V)
    m2 = jnp.max(logits, axis=1, keepdims=True)
    lse = jnp.log(jnp.sum(jnp.exp(logits - m2), axis=1, keepdims=True)) + m2
    logp_ref[0] = logits - lse


def prepare_params(params, weight_dtype=jnp.float32):
    """One-time, out-of-hot-path conversion of PyTorch-shaped params to the
    lane-dense, pre-transposed layouts the kernel consumes."""
    f32 = jnp.float32
    H = params["embedding"].shape[1]
    V = params["w_out"].shape[0]
    L = params["w_attn"].shape[0]
    return dict(
        embedding=params["embedding"].astype(weight_dtype),      # (V, H), stays in HBM
        w_attn=params["w_attn"].T.astype(weight_dtype),          # (2H, L)
        b_attn=params["b_attn"].reshape(1, L).astype(f32),
        w_comb=params["w_combine"].T.astype(weight_dtype),       # (2H, H)
        b_comb=params["b_combine"].reshape(1, H).astype(f32),
        w_gx=params["w_ih"].T.astype(weight_dtype),              # (H, 3H), cols [r|z|n]
        w_gh=params["w_hh"].T.astype(weight_dtype),              # (H, 3H), cols [r|z|n]
        b_gx=params["b_ih"].reshape(1, 3 * H).astype(f32),
        b_gh=params["b_hh"].reshape(1, 3 * H).astype(f32),
        w_out=params["w_out"].T.astype(weight_dtype),            # (H, V)
        b_out=params["b_out"].reshape(1, V).astype(f32),
    )


def attn_decoder_forward(prepped, input_idx, hidden, encoder_output, encoder_outputs,
                         n_layers=1, approx_softmax=True):
    """Runs T teacher-forced decode steps in ONE pallas_call (weights loaded once).
    `input_idx` may be a scalar / (1,1) token (T=1 == module.forward) or a (T,)
    token sequence.  `encoder_output` is unused, as in the PyTorch module."""
    del encoder_output
    emb = prepped["embedding"]
    V_emb, H = emb.shape
    L = prepped["w_attn"].shape[1]
    V = prepped["w_out"].shape[1]

    idx = jnp.asarray(input_idx).reshape(-1).astype(jnp.int32)
    idx = jnp.clip(idx, 0, V_emb - 1)       # DMA OOB would fault (PyTorch would raise)
    T = idx.shape[0]

    h0 = jnp.asarray(hidden).reshape(1, H)  # native dtype; cast happens in-kernel
    enc = jnp.asarray(encoder_outputs)      # (L, H) native dtype; no wrapper astype

    kernel = functools.partial(_attn_decoder_kernel, n_layers, H, approx_softmax)

    def resident(block):                    # same block every step -> loaded once
        return pl.BlockSpec(block, lambda t, idx_ref, _b=block: (0,) * len(_b))

    grid_spec = pltpu.PrefetchScalarGridSpec(
        num_scalar_prefetch=1,              # token ids -> SMEM before the grid runs
        grid=(T,),
        in_specs=[
            pl.BlockSpec(memory_space=pl.ANY),        # embedding table stays in HBM
            resident((1, H)),                         # hidden
            resident((L, H)),                         # encoder_outputs
            resident((2 * H, L)), resident((1, L)),   # attn
            resident((2 * H, H)), resident((1, H)),   # attn_combine
            resident((H, 3 * H)), resident((H, 3 * H)),   # GRU W_ih^T, W_hh^T
            resident((1, 3 * H)), resident((1, 3 * H)),   # GRU biases
            resident((H, V)), resident((1, V)),       # out
        ],
        out_specs=(
            pl.BlockSpec((1, 1, V), lambda t, idx_ref: (t, 0, 0)),   # log-probs per step
            pl.BlockSpec((1, H), lambda t, idx_ref: (0, 0)),         # final hidden
            pl.BlockSpec((1, 1, L), lambda t, idx_ref: (t, 0, 0)),   # attn weights per step
        ),
        scratch_shapes=[
            pltpu.VMEM((1, H), emb.dtype),            # gathered embedding row
            pltpu.VMEM((1, H), jnp.float32),          # hidden carry across steps
            pltpu.SemaphoreType.DMA,                  # embedding-row DMA completion
        ],
    )

    logp, newh, aw = pl.pallas_call(
        kernel,
        grid_spec=grid_spec,
        out_shape=(jax.ShapeDtypeStruct((T, 1, V), jnp.float32),
                   jax.ShapeDtypeStruct((1, H), jnp.float32),
                   jax.ShapeDtypeStruct((T, 1, L), jnp.float32)),
        compiler_params=pltpu.CompilerParams(
            dimension_semantics=("arbitrary",),       # step axis carries hidden state
            vmem_limit_bytes=48 * 1024 * 1024),       # <= v7x 64 MiB, > default 16/32 MiB
    )(idx, emb, h0, enc,
      prepped["w_attn"], prepped["b_attn"],
      prepped["w_comb"], prepped["b_comb"],
      prepped["w_gx"], prepped["w_gh"],
      prepped["b_gx"], prepped["b_gh"],
      prepped["w_out"], prepped["b_out"])

    return logp.reshape(T, V), newh.reshape(1, 1, H), aw.reshape(T, L)


def init_params(key, hidden_size, output_size, max_length):
    """Deterministic, PyTorch-style initialization (shapes match the nn.Module)."""
    ks = jax.random.split(key, 11)

    def unif(k, shape, bound):
        return jax.random.uniform(k, shape, jnp.float32, -bound, bound)

    b2 = 1.0 / math.sqrt(2 * hidden_size)
    bh = 1.0 / math.sqrt(hidden_size)
    return dict(
        embedding=jax.random.normal(ks[0], (output_size, hidden_size), jnp.float32),
        w_attn=unif(ks[1], (max_length, 2 * hidden_size), b2),
        b_attn=unif(ks[2], (max_length,), b2),
        w_combine=unif(ks[3], (hidden_size, 2 * hidden_size), b2),
        b_combine=unif(ks[4], (hidden_size,), b2),
        w_ih=unif(ks[5], (3 * hidden_size, hidden_size), bh),
        b_ih=unif(ks[6], (3 * hidden_size,), bh),
        w_hh=unif(ks[7], (3 * hidden_size, hidden_size), bh),
        b_hh=unif(ks[8], (3 * hidden_size,), bh),
        w_out=unif(ks[9], (output_size, hidden_size), bh),
        b_out=unif(ks[10], (output_size,), bh),
    )


def _reference_forward(params, input_idx, hidden, encoder_outputs, n_layers=1):
    """Pure-JAX reference of the PyTorch forward (single step, dropout = identity)."""
    H = params["embedding"].shape[1]
    embedded = params["embedding"][input_idx].reshape(1, H)
    h = hidden.reshape(1, H)
    cat1 = jnp.concatenate([embedded, h], axis=1)
    aw = jax.nn.softmax(cat1 @ params["w_attn"].T + params["b_attn"], axis=1)
    attn_applied = aw @ encoder_outputs
    cat2 = jnp.concatenate([embedded, attn_applied], axis=1)
    output = cat2 @ params["w_combine"].T + params["b_combine"]
    w_ih = params["w_ih"].reshape(3, H, H)
    b_ih = params["b_ih"].reshape(3, H)
    w_hh = params["w_hh"].reshape(3, H, H)
    b_hh = params["b_hh"].reshape(3, H)
    for _ in range(n_layers):
        x = jnp.maximum(output, 0.0)
        r = jax.nn.sigmoid(x @ w_ih[0].T + b_ih[0] + h @ w_hh[0].T + b_hh[0])
        z = jax.nn.sigmoid(x @ w_ih[1].T + b_ih[1] + h @ w_hh[1].T + b_hh[1])
        n = jnp.tanh(x @ w_ih[2].T + b_ih[2] + r * (h @ w_hh[2].T + b_hh[2]))
        h = (1.0 - z) * n + z * h
        output = h
    logits = output @ params["w_out"].T + params["b_out"]
    return jax.nn.log_softmax(logits, axis=1), h.reshape(1, 1, H), aw


if __name__ == "__main__":
    HIDDEN = 32        # hidden_size
    VOCAB = 12         # output_size
    MAX_LEN = 8        # opt.MAX_LENGTH_TARGET
    N_LAYERS = 1

    key = jax.random.PRNGKey(0)
    pkey, ekey = jax.random.split(key)
    params = init_params(pkey, HIDDEN, VOCAB, MAX_LEN)

    hidden0 = jnp.zeros((1, 1, HIDDEN), jnp.float32)                 # initHidden()
    encoder_output = jnp.zeros((1, HIDDEN), jnp.float32)             # unused by forward
    encoder_outputs = jax.random.normal(ekey, (MAX_LEN, HIDDEN), jnp.float32)

    # ---- single-step (T=1, exact module semantics), f32 weights, exact softmax ----
    prepped_f32 = prepare_params(params, weight_dtype=jnp.float32)
    input_idx = jnp.array([[3]], dtype=jnp.int32)
    logp, new_hidden, attn_w = attn_decoder_forward(
        prepped_f32, input_idx, hidden0, encoder_output, encoder_outputs,
        n_layers=N_LAYERS, approx_softmax=False)
    jax.block_until_ready((logp, new_hidden, attn_w))

    ref_logp, ref_h, ref_aw = _reference_forward(
        params, 3, hidden0, encoder_outputs, n_layers=N_LAYERS)
    assert logp.shape == (1, VOCAB) and new_hidden.shape == (1, 1, HIDDEN) \
        and attn_w.shape == (1, MAX_LEN)
    assert jnp.allclose(logp, ref_logp, atol=1e-5)
    assert jnp.allclose(new_hidden, ref_h, atol=1e-5)
    assert jnp.allclose(attn_w, ref_aw, atol=1e-5)

    # ---- multi-step teacher-forced decode: one pallas_call, weights loaded once ----
    tokens = [3, 5, 0, 9]
    logp_seq, newh_seq, aw_seq = attn_decoder_forward(
        prepped_f32, jnp.array(tokens, jnp.int32), hidden0, encoder_output,
        encoder_outputs, n_layers=N_LAYERS, approx_softmax=False)
    jax.block_until_ready((logp_seq, newh_seq, aw_seq))

    h_ref = hidden0
    for s, tok in enumerate(tokens):
        lp_r, h_ref, aw_r = _reference_forward(
            params, tok, h_ref, encoder_outputs, n_layers=N_LAYERS)
        assert jnp.allclose(logp_seq[s], lp_r[0], atol=1e-4)
        assert jnp.allclose(aw_seq[s], aw_r[0], atol=1e-4)
    assert jnp.allclose(newh_seq, h_ref, atol=1e-4)

    # ---- bf16 weight storage (v5e/v6e/v7x), approx-reciprocal softmax (default) ----
    prepped_bf16 = prepare_params(params, weight_dtype=jnp.bfloat16)
    logp_bf, newh_bf, aw_bf = attn_decoder_forward(
        prepped_bf16, jnp.array(tokens, jnp.int32), hidden0, encoder_output,
        encoder_outputs, n_layers=N_LAYERS)
    jax.block_until_ready((logp_bf, newh_bf, aw_bf))
    assert jnp.allclose(logp_bf, logp_seq, atol=2e-1)
    assert jnp.allclose(newh_bf, newh_seq, atol=1e-1)
    assert jnp.allclose(aw_bf, aw_seq, atol=1e-1)

    print("KERNEL_OK")
</pallas_src>

<mosaic_0001>
module attributes {stable_mosaic.version = 11 : i64} {
  func.func @_attn_decoder_kernel(%arg0: i32, %arg1: memref<1xi32, #tpu.memory_space<smem>>, %arg2: memref<12x32xf32, #tpu.memory_space<any>>, %arg3: memref<1x32xf32, #tpu.memory_space<vmem>>, %arg4: memref<8x32xf32, #tpu.memory_space<vmem>>, %arg5: memref<64x8xf32, #tpu.memory_space<vmem>>, %arg6: memref<1x8xf32, #tpu.memory_space<vmem>>, %arg7: memref<64x32xf32, #tpu.memory_space<vmem>>, %arg8: memref<1x32xf32, #tpu.memory_space<vmem>>, %arg9: memref<32x96xf32, #tpu.memory_space<vmem>>, %arg10: memref<32x96xf32, #tpu.memory_space<vmem>>, %arg11: memref<1x96xf32, #tpu.memory_space<vmem>>, %arg12: memref<1x96xf32, #tpu.memory_space<vmem>>, %arg13: memref<32x12xf32, #tpu.memory_space<vmem>>, %arg14: memref<1x12xf32, #tpu.memory_space<vmem>>, %arg15: memref<1x1x12xf32, #tpu.memory_space<vmem>>, %arg16: memref<1x32xf32, #tpu.memory_space<vmem>>, %arg17: memref<1x1x8xf32, #tpu.memory_space<vmem>>, %arg18: memref<1x32xf32, #tpu.memory_space<vmem>>, %arg19: memref<1x32xf32, #tpu.memory_space<vmem>>, %arg20: memref<!tpu.dma_semaphore, #tpu.memory_space<semaphore_mem>>) attributes {dimension_semantics = [#tpu.dimension_semantics<arbitrary>], iteration_bounds = array<i64: 1>, scalar_prefetch = 1 : i64, scratch_operands = 3 : i64, tpu.core_type = #tpu.core_type<tc>, window_params = [{}, {pipeline_mode = #tpu.pipeline_mode<synchronous>, transform_indices = @transform_1, window_bounds = array<i64: 1, 32>}, {pipeline_mode = #tpu.pipeline_mode<synchronous>, transform_indices = @transform_2, window_bounds = array<i64: 8, 32>}, {pipeline_mode = #tpu.pipeline_mode<synchronous>, transform_indices = @transform_3, window_bounds = array<i64: 64, 8>}, {pipeline_mode = #tpu.pipeline_mode<synchronous>, transform_indices = @transform_4, window_bounds = array<i64: 1, 8>}, {pipeline_mode = #tpu.pipeline_mode<synchronous>, transform_indices = @transform_5, window_bounds = array<i64: 64, 32>}, {pipeline_mode = #tpu.pipeline_mode<synchronous>, transform_indices = @transform_6, window_bounds = array<i64: 1, 32>}, {pipeline_mode = #tpu.pipeline_mode<synchronous>, transform_indices = @transform_7, window_bounds = array<i64: 32, 96>}, {pipeline_mode = #tpu.pipeline_mode<synchronous>, transform_indices = @transform_8, window_bounds = array<i64: 32, 96>}, {pipeline_mode = #tpu.pipeline_mode<synchronous>, transform_indices = @transform_9, window_bounds = array<i64: 1, 96>}, {pipeline_mode = #tpu.pipeline_mode<synchronous>, transform_indices = @transform_10, window_bounds = array<i64: 1, 96>}, {pipeline_mode = #tpu.pipeline_mode<synchronous>, transform_indices = @transform_11, window_bounds = array<i64: 32, 12>}, {pipeline_mode = #tpu.pipeline_mode<synchronous>, transform_indices = @transform_12, window_bounds = array<i64: 1, 12>}, {transform_indices = @transform_13, window_bounds = array<i64: 1, 1, 12>}, {pipeline_mode = #tpu.pipeline_mode<synchronous>, transform_indices = @transform_14, window_bounds = array<i64: 1, 32>}, {transform_indices = @transform_15, window_bounds = array<i64: 1, 1, 8>}]} {
    %0 = arith.index_cast %arg0 : i32 to index
    %1 = memref.load %arg1[%0] : memref<1xi32, #tpu.memory_space<smem>>
    %c0_i32 = arith.constant 0 : i32
    %2 = tpu.memref_slice %arg2[%1, %c0_i32] : memref<12x32xf32, #tpu.memory_space<any>> -> memref<1x32xf32, #tpu.memory_space<any>>
    tpu.enqueue_dma source(%2 : memref<1x32xf32, #tpu.memory_space<any>>) target(%arg18 : memref<1x32xf32, #tpu.memory_space<vmem>>) target_semaphore(%arg20 : memref<!tpu.dma_semaphore, #tpu.memory_space<semaphore_mem>>)
    %c0_i32_0 = arith.constant 0 : i32
    %3 = arith.cmpi eq, %arg0, %c0_i32_0 : i32
    %4 = arith.extui %3 : i1 to i32
    %c0_i32_1 = arith.constant 0 : i32
    %5 = arith.cmpi ne, %4, %c0_i32_1 : i32
    scf.if %5 {
      %c0_56 = arith.constant 0 : index
      %c0_57 = arith.constant 0 : index
      %93 = vector.load %arg3[%c0_56, %c0_57] : memref<1x32xf32, #tpu.memory_space<vmem>>, vector<1x32xf32>
      %c0_58 = arith.constant 0 : index
      %c0_59 = arith.constant 0 : index
      %94 = vector.load %arg19[%c0_58, %c0_59] : memref<1x32xf32, #tpu.memory_space<vmem>>, vector<1x32xf32>
      tpu.vector_store %arg19[%c0_58, %c0_59], %93 {strides = array<i32>} : memref<1x32xf32, #tpu.memory_space<vmem>>, vector<1x32xf32>,
    } else {
    }
    %c0 = arith.constant 0 : index
    %c0_2 = arith.constant 0 : index
    %6 = vector.load %arg19[%c0, %c0_2] : memref<1x32xf32, #tpu.memory_space<vmem>>, vector<1x32xf32>
    %c0_i32_3 = arith.constant 0 : i32
    %7 = tpu.memref_slice %arg2[%1, %c0_i32_3] : memref<12x32xf32, #tpu.memory_space<any>> -> memref<1x32xf32, #tpu.memory_space<any>>
    tpu.wait_dma2 semaphore(%arg20 : memref<!tpu.dma_semaphore, #tpu.memory_space<semaphore_mem>>) src(%7 : memref<1x32xf32, #tpu.memory_space<any>>) dst(%arg18 : memref<1x32xf32, #tpu.memory_space<vmem>>)
    %c0_4 = arith.constant 0 : index
    %c0_5 = arith.constant 0 : index
    %8 = vector.load %arg18[%c0_4, %c0_5] : memref<1x32xf32, #tpu.memory_space<vmem>>, vector<1x32xf32>
    %c0_6 = arith.constant 0 : index
    %c0_7 = arith.constant 0 : index
    %9 = vector.load %arg5[%c0_6, %c0_7] : memref<64x8xf32, #tpu.memory_space<vmem>>, vector<32x8xf32>
    %cst = arith.constant dense<0.000000e+00> : vector<1x8xf32>
    %10 = tpu.matmul %8, %9, %cst {dimension_numbers = #tpu.dot_dimension_numbers<[1], [0], [0], [1], [0, 0, 1, 1], [], []>} : vector<1x32xf32>, vector<32x8xf32>, vector<1x8xf32> -> vector<1x8xf32>
    %c32 = arith.constant 32 : index
    %c0_8 = arith.constant 0 : index
    %11 = vector.load %arg5[%c32, %c0_8] : memref<64x8xf32, #tpu.memory_space<vmem>>, vector<32x8xf32>
    %cst_9 = arith.constant dense<0.000000e+00> : vector<1x8xf32>
    %12 = tpu.matmul %6, %11, %cst_9 {dimension_numbers = #tpu.dot_dimension_numbers<[1], [0], [0], [1], [0, 0, 1, 1], [], []>} : vector<1x32xf32>, vector<32x8xf32>, vector<1x8xf32> -> vector<1x8xf32>
    %13 = arith.addf %10, %12 : vector<1x8xf32>
    %c0_10 = arith.constant 0 : index
    %c0_11 = arith.constant 0 : index
    %14 = vector.load %arg6[%c0_10, %c0_11] : memref<1x8xf32, #tpu.memory_space<vmem>>, vector<1x8xf32>
    %15 = arith.addf %13, %14 : vector<1x8xf32>
    %cst_12 = arith.constant dense<0xFF800000> : vector<1xf32>
    %16 = vector.multi_reduction <maximumf>, %15, %cst_12 [1] : vector<1x8xf32> to vector<1xf32>
    %17 = vector.shape_cast %16 : vector<1xf32> to vector<1x1xf32>
    %18 = vector.broadcast %17 : vector<1x1xf32> to vector<1x8xf32>
    %19 = arith.subf %15, %18 : vector<1x8xf32>
    %20 = math.exp %19 : vector<1x8xf32>
    %cst_13 = arith.constant dense<0.000000e+00> : vector<1xf32>
    %21 = vector.multi_reduction <add>, %20, %cst_13 [1] : vector<1x8xf32> to vector<1xf32>
    %22 = vector.shape_cast %21 : vector<1xf32> to vector<1x1xf32>
    %23 = vector.broadcast %22 : vector<1x1xf32> to vector<1x8xf32>
    %24 = arith.divf %20, %23 : vector<1x8xf32>
    %c0_14 = arith.constant 0 : index
    %c0_15 = arith.constant 0 : index
    %c0_16 = arith.constant 0 : index
    %25 = vector.load %arg17[%c0_14, %c0_15, %c0_16] : memref<1x1x8xf32, #tpu.memory_space<vmem>>, vector<1x1x8xf32>
    %26 = vector.shape_cast %25 : vector<1x1x8xf32> to vector<1x8xf32>
    %27 = vector.shape_cast %24 : vector<1x8xf32> to vector<1x1x8xf32>
    tpu.vector_store %arg17[%c0_14, %c0_15, %c0_16], %27 {strides = array<i32>} : memref<1x1x8xf32, #tpu.memory_space<vmem>>, vector<1x1x8xf32>,
    %c0_17 = arith.constant 0 : index
    %c0_18 = arith.constant 0 : index
    %28 = vector.load %arg4[%c0_17, %c0_18] : memref<8x32xf32, #tpu.memory_space<vmem>>, vector<8x32xf32>
    %cst_19 = arith.constant dense<0.000000e+00> : vector<1x32xf32>
    %29 = tpu.matmul %24, %28, %cst_19 {dimension_numbers = #tpu.dot_dimension_numbers<[1], [0], [0], [1], [0, 0, 1, 1], [], []>} : vector<1x8xf32>, vector<8x32xf32>, vector<1x32xf32> -> vector<1x32xf32>
    %c0_20 = arith.constant 0 : index
    %c0_21 = arith.constant 0 : index
    %30 = vector.load %arg7[%c0_20, %c0_21] : memref<64x32xf32, #tpu.memory_space<vmem>>, vector<32x32xf32>
    %cst_22 = arith.constant dense<0.000000e+00> : vector<1x32xf32>
    %31 = tpu.matmul %8, %30, %cst_22 {dimension_numbers = #tpu.dot_dimension_numbers<[1], [0], [0], [1], [0, 0, 1, 1], [], []>} : vector<1x32xf32>, vector<32x32xf32>, vector<1x32xf32> -> vector<1x32xf32>
    %c32_23 = arith.constant 32 : index
    %c0_24 = arith.constant 0 : index
    %32 = vector.load %arg7[%c32_23, %c0_24] : memref<64x32xf32, #tpu.memory_space<vmem>>, vector<32x32xf32>
    %cst_25 = arith.constant dense<0.000000e+00> : vector<1x32xf32>
    %33 = tpu.matmul %29, %32, %cst_25 {dimension_numbers = #tpu.dot_dimension_numbers<[1], [0], [0], [1], [0, 0, 1, 1], [], []>} : vector<1x32xf32>, vector<32x32xf32>, vector<1x32xf32> -> vector<1x32xf32>
    %34 = arith.addf %31, %33 : vector<1x32xf32>
    %c0_26 = arith.constant 0 : index
    %c0_27 = arith.constant 0 : index
    %35 = vector.load %arg8[%c0_26, %c0_27] : memref<1x32xf32, #tpu.memory_space<vmem>>, vector<1x32xf32>
    %36 = arith.addf %34, %35 : vector<1x32xf32>
    %cst_28 = arith.constant 0.000000e+00 : f32
    %37 = vector.broadcast %cst_28 : f32 to vector<1x32xf32>
    %38 = arith.maximumf %36, %37 : vector<1x32xf32>
    %c0_29 = arith.constant 0 : index
    %c0_30 = arith.constant 0 : index
    %39 = vector.load %arg9[%c0_29, %c0_30] : memref<32x96xf32, #tpu.memory_space<vmem>>, vector<32x96xf32>
    %cst_31 = arith.constant dense<0.000000e+00> : vector<1x96xf32>
    %40 = tpu.matmul %38, %39, %cst_31 {dimension_numbers = #tpu.dot_dimension_numbers<[1], [0], [0], [1], [0, 0, 1, 1], [], []>} : vector<1x32xf32>, vector<32x96xf32>, vector<1x96xf32> -> vector<1x96xf32>
    %c0_32 = arith.constant 0 : index
    %c0_33 = arith.constant 0 : index
    %41 = vector.load %arg11[%c0_32, %c0_33] : memref<1x96xf32, #tpu.memory_space<vmem>>, vector<1x96xf32>
    %42 = arith.addf %40, %41 : vector<1x96xf32>
    %c0_34 = arith.constant 0 : index
    %c0_35 = arith.constant 0 : index
    %43 = vector.load %arg10[%c0_34, %c0_35] : memref<32x96xf32, #tpu.memory_space<vmem>>, vector<32x96xf32>
    %cst_36 = arith.constant dense<0.000000e+00> : vector<1x96xf32>
    %44 = tpu.matmul %6, %43, %cst_36 {dimension_numbers = #tpu.dot_dimension_numbers<[1], [0], [0], [1], [0, 0, 1, 1], [], []>} : vector<1x32xf32>, vector<32x96xf32>, vector<1x96xf32> -> vector<1x96xf32>
    %c0_37 = arith.constant 0 : index
    %c0_38 = arith.constant 0 : index
    %45 = vector.load %arg12[%c0_37, %c0_38] : memref<1x96xf32, #tpu.memory_space<vmem>>, vector<1x96xf32>
    %46 = arith.addf %44, %45 : vector<1x96xf32>
    %47 = vector.extract_strided_slice %42 {offsets = [0, 0], sizes = [1, 32], strides = [1, 1]} : vector<1x96xf32> to vector<1x32xf32>
    %48 = vector.extract_strided_slice %46 {offsets = [0, 0], sizes = [1, 32], strides = [1, 1]} : vector<1x96xf32> to vector<1x32xf32>
    %49 = arith.addf %47, %48 : vector<1x32xf32>
    %50 = arith.negf %49 : vector<1x32xf32>
    %51 = math.exp %50 : vector<1x32xf32>
    %cst_39 = arith.constant 1.000000e+00 : f32
    %52 = vector.broadcast %cst_39 : f32 to vector<1x32xf32>
    %53 = arith.addf %52, %51 : vector<1x32xf32>
    %54 = arith.divf %52, %53 : vector<1x32xf32>
    %55 = vector.extract_strided_slice %42 {offsets = [0, 32], sizes = [1, 32], strides = [1, 1]} : vector<1x96xf32> to vector<1x32xf32>
    %56 = vector.extract_strided_slice %46 {offsets = [0, 32], sizes = [1, 32], strides = [1, 1]} : vector<1x96xf32> to vector<1x32xf32>
    %57 = arith.addf %55, %56 : vector<1x32xf32>
    %58 = arith.negf %57 : vector<1x32xf32>
    %59 = math.exp %58 : vector<1x32xf32>
    %cst_40 = arith.constant 1.000000e+00 : f32
    %60 = vector.broadcast %cst_40 : f32 to vector<1x32xf32>
    %61 = arith.addf %60, %59 : vector<1x32xf32>
    %62 = arith.divf %60, %61 : vector<1x32xf32>
    %63 = vector.extract_strided_slice %42 {offsets = [0, 64], sizes = [1, 32], strides = [1, 1]} : vector<1x96xf32> to vector<1x32xf32>
    %64 = vector.extract_strided_slice %46 {offsets = [0, 64], sizes = [1, 32], strides = [1, 1]} : vector<1x96xf32> to vector<1x32xf32>
    %65 = arith.mulf %54, %64 : vector<1x32xf32>
    %66 = arith.addf %63, %65 : vector<1x32xf32>
    %67 = math.tanh %66 : vector<1x32xf32>
    %cst_41 = arith.constant 1.000000e+00 : f32
    %68 = vector.broadcast %cst_41 : f32 to vector<1x32xf32>
    %69 = arith.subf %68, %62 : vector<1x32xf32>
    %70 = arith.mulf %69, %67 : vector<1x32xf32>
    %71 = arith.mulf %62, %6 : vector<1x32xf32>
    %72 = arith.addf %70, %71 : vector<1x32xf32>
    %c0_42 = arith.constant 0 : index
    %c0_43 = arith.constant 0 : index
    %73 = vector.load %arg19[%c0_42, %c0_43] : memref<1x32xf32, #tpu.memory_space<vmem>>, vector<1x32xf32>
    tpu.vector_store %arg19[%c0_42, %c0_43], %72 {strides = array<i32>} : memref<1x32xf32, #tpu.memory_space<vmem>>, vector<1x32xf32>,
    %c0_44 = arith.constant 0 : index
    %c0_45 = arith.constant 0 : index
    %74 = vector.load %arg16[%c0_44, %c0_45] : memref<1x32xf32, #tpu.memory_space<vmem>>, vector<1x32xf32>
    tpu.vector_store %arg16[%c0_44, %c0_45], %72 {strides = array<i32>} : memref<1x32xf32, #tpu.memory_space<vmem>>, vector<1x32xf32>,
    %c0_46 = arith.constant 0 : index
    %c0_47 = arith.constant 0 : index
    %75 = vector.load %arg13[%c0_46, %c0_47] : memref<32x12xf32, #tpu.memory_space<vmem>>, vector<32x12xf32>
    %cst_48 = arith.constant dense<0.000000e+00> : vector<1x12xf32>
    %76 = tpu.matmul %72, %75, %cst_48 {dimension_numbers = #tpu.dot_dimension_numbers<[1], [0], [0], [1], [0, 0, 1, 1], [], []>} : vector<1x32xf32>, vector<32x12xf32>, vector<1x12xf32> -> vector<1x12xf32>
    %c0_49 = arith.constant 0 : index
    %c0_50 = arith.constant 0 : index
    %77 = vector.load %arg14[%c0_49, %c0_50] : memref<1x12xf32, #tpu.memory_space<vmem>>, vector<1x12xf32>
    %78 = arith.addf %76, %77 : vector<1x12xf32>
    %cst_51 = arith.constant dense<0xFF800000> : vector<1xf32>
    %79 = vector.multi_reduction <maximumf>, %78, %cst_51 [1] : vector<1x12xf32> to vector<1xf32>
    %80 = vector.shape_cast %79 : vector<1xf32> to vector<1x1xf32>
    %81 = vector.broadcast %80 : vector<1x1xf32> to vector<1x12xf32>
    %82 = arith.subf %78, %81 : vector<1x12xf32>
    %83 = math.exp %82 : vector<1x12xf32>
    %cst_52 = arith.constant dense<0.000000e+00> : vector<1xf32>
    %84 = vector.multi_reduction <add>, %83, %cst_52 [1] : vector<1x12xf32> to vector<1xf32>
    %85 = vector.shape_cast %84 : vector<1xf32> to vector<1x1xf32>
    %86 = math.log %85 : vector<1x1xf32>
    %87 = arith.addf %86, %80 : vector<1x1xf32>
    %88 = vector.broadcast %87 : vector<1x1xf32> to vector<1x12xf32>
    %89 = arith.subf %78, %88 : vector<1x12xf32>
    %c0_53 = arith.constant 0 : index
    %c0_54 = arith.constant 0 : index
    %c0_55 = arith.constant 0 : index
    %90 = vector.load %arg15[%c0_53, %c0_54, %c0_55] : memref<1x1x12xf32, #tpu.memory_space<vmem>>, vector<1x1x12xf32>
    %91 = vector.shape_cast %90 : vector<1x1x12xf32> to vector<1x12xf32>
    %92 = vector.shape_cast %89 : vector<1x12xf32> to vector<1x1x12xf32>
    tpu.vector_store %arg15[%c0_53, %c0_54, %c0_55], %92 {strides = array<i32>} : memref<1x1x12xf32, #tpu.memory_space<vmem>>, vector<1x1x12xf32>,
    return
  }
  func.func @transform_1(%arg0: i32, %arg1: memref<1xi32, #tpu.memory_space<smem>>) -> (i32, i32) {
    %c0_i32 = arith.constant 0 : i32
    %c0_i32_0 = arith.constant 0 : i32
    %c0_i32_1 = arith.constant 0 : i32
    return %c0_i32, %c0_i32_0 : i32, i32
  }
  func.func @transform_2(%arg0: i32, %arg1: memref<1xi32, #tpu.memory_space<smem>>) -> (i32, i32) {
    %c0_i32 = arith.constant 0 : i32
    %c0_i32_0 = arith.constant 0 : i32
    %c0_i32_1 = arith.constant 0 : i32
    return %c0_i32, %c0_i32_0 : i32, i32
  }
  func.func @transform_3(%arg0: i32, %arg1: memref<1xi32, #tpu.memory_space<smem>>) -> (i32, i32) {
    %c0_i32 = arith.constant 0 : i32
    %c0_i32_0 = arith.constant 0 : i32
    %c0_i32_1 = arith.constant 0 : i32
    return %c0_i32, %c0_i32_0 : i32, i32
  }
  func.func @transform_4(%arg0: i32, %arg1: memref<1xi32, #tpu.memory_space<smem>>) -> (i32, i32) {
    %c0_i32 = arith.constant 0 : i32
    %c0_i32_0 = arith.constant 0 : i32
    %c0_i32_1 = arith.constant 0 : i32
    return %c0_i32, %c0_i32_0 : i32, i32
  }
  func.func @transform_5(%arg0: i32, %arg1: memref<1xi32, #tpu.memory_space<smem>>) -> (i32, i32) {
    %c0_i32 = arith.constant 0 : i32
    %c0_i32_0 = arith.constant 0 : i32
    %c0_i32_1 = arith.constant 0 : i32
    return %c0_i32, %c0_i32_0 : i32, i32
  }
  func.func @transform_6(%arg0: i32, %arg1: memref<1xi32, #tpu.memory_space<smem>>) -> (i32, i32) {
    %c0_i32 = arith.constant 0 : i32
    %c0_i32_0 = arith.constant 0 : i32
    %c0_i32_1 = arith.constant 0 : i32
    return %c0_i32, %c0_i32_0 : i32, i32
  }
  func.func @transform_7(%arg0: i32, %arg1: memref<1xi32, #tpu.memory_space<smem>>) -> (i32, i32) {
    %c0_i32 = arith.constant 0 : i32
    %c0_i32_0 = arith.constant 0 : i32
    %c0_i32_1 = arith.constant 0 : i32
    return %c0_i32, %c0_i32_0 : i32, i32
  }
  func.func @transform_8(%arg0: i32, %arg1: memref<1xi32, #tpu.memory_space<smem>>) -> (i32, i32) {
    %c0_i32 = arith.constant 0 : i32
    %c0_i32_0 = arith.constant 0 : i32
    %c0_i32_1 = arith.constant 0 : i32
    return %c0_i32, %c0_i32_0 : i32, i32
  }
  func.func @transform_9(%arg0: i32, %arg1: memref<1xi32, #tpu.memory_space<smem>>) -> (i32, i32) {
    %c0_i32 = arith.constant 0 : i32
    %c0_i32_0 = arith.constant 0 : i32
    %c0_i32_1 = arith.constant 0 : i32
    return %c0_i32, %c0_i32_0 : i32, i32
  }
  func.func @transform_10(%arg0: i32, %arg1: memref<1xi32, #tpu.memory_space<smem>>) -> (i32, i32) {
    %c0_i32 = arith.constant 0 : i32
    %c0_i32_0 = arith.constant 0 : i32
    %c0_i32_1 = arith.constant 0 : i32
    return %c0_i32, %c0_i32_0 : i32, i32
  }
  func.func @transform_11(%arg0: i32, %arg1: memref<1xi32, #tpu.memory_space<smem>>) -> (i32, i32) {
    %c0_i32 = arith.constant 0 : i32
    %c0_i32_0 = arith.constant 0 : i32
    %c0_i32_1 = arith.constant 0 : i32
    return %c0_i32, %c0_i32_0 : i32, i32
  }
  func.func @transform_12(%arg0: i32, %arg1: memref<1xi32, #tpu.memory_space<smem>>) -> (i32, i32) {
    %c0_i32 = arith.constant 0 : i32
    %c0_i32_0 = arith.constant 0 : i32
    %c0_i32_1 = arith.constant 0 : i32
    return %c0_i32, %c0_i32_0 : i32, i32
  }
  func.func @transform_13(%arg0: i32, %arg1: memref<1xi32, #tpu.memory_space<smem>>) -> (i32, i32, i32) {
    %c0_i32 = arith.constant 0 : i32
    %c0_i32_0 = arith.constant 0 : i32
    %c0_i32_1 = arith.constant 0 : i32
    return %arg0, %c0_i32, %c0_i32_0 : i32, i32, i32
  }
  func.func @transform_14(%arg0: i32, %arg1: memref<1xi32, #tpu.memory_space<smem>>) -> (i32, i32) {
    %c0_i32 = arith.constant 0 : i32
    %c0_i32_0 = arith.constant 0 : i32
    %c0_i32_1 = arith.constant 0 : i32
    return %c0_i32, %c0_i32_0 : i32, i32
  }
  func.func @transform_15(%arg0: i32, %arg1: memref<1xi32, #tpu.memory_space<smem>>) -> (i32, i32, i32) {
    %c0_i32 = arith.constant 0 : i32
    %c0_i32_0 = arith.constant 0 : i32
    %c0_i32_1 = arith.constant 0 : i32
    return %arg0, %c0_i32, %c0_i32_0 : i32, i32, i32
  }
}

</mosaic_0001>

<llo_original>
// kernel: tpu_custom_call.1
$region0: #{tpu_custom_call.1}
  #allocation0 [shape = 'u32[]', space=smem, size = 0x4, offset = 0x4, fixed_abs, tag = 'smem constant byte address 0x4 - core index']
  #allocation1 [shape = 'u32[144,128]{1,0:T(1,128)}', space=vmem, size = 0x12000, scoped, tag = 'internal scratch']
  #allocation2 [shape = 'f32[1,32]{1,0:T(1,128)}', space=vmem, size = 0x200, scoped, tag = 'scratch operand']
  #allocation3 [shape = 'f32[1,32]{1,0:T(1,128)}', space=vmem, size = 0x200, scoped, tag = 'scratch operand']
  #allocation4 [shape = 's32[1]{0}', space=sflag, size = 0x4, scoped, tag = 'scratch operand']
  #allocation5 [shape = 's32[1]{0}', space=sflag, size = 0x4, scoped, tag = 'scoped memory for tpu_custom_call.1']
  #allocation6 [shape = 's32[1]{0:T(128)S(6)}', space=smem, size = 0x200, scoped, tag = 'prefetched SMEM operand 0']
  #allocation12 [shape = 's32[]', space=sflag, size = 0x4, offset = 0, fixed_abs, tag = 'sflag constant byte address 0x0 - dummy sync flag']
  %s0 = inlined_call_operand.<no memory space> [shape: s32[1], index: 0, kind: input, shape index: {}]
  %s1 = inlined_call_operand.vmem [shape: f32[12,32], index: 1, kind: input, shape index: {}]
  %s2 = inlined_call_operand.vmem [shape: f32[1,32], index: 2, kind: input, shape index: {}]
  %s3 = inlined_call_operand.vmem [shape: f32[8,32], index: 3, kind: input, shape index: {}]
  %s4 = inlined_call_operand.vmem [shape: f32[64,8], index: 4, kind: input, shape index: {}]
  %s5 = inlined_call_operand.vmem [shape: f32[1,8], index: 5, kind: input, shape index: {}]
  %s6 = inlined_call_operand.vmem [shape: f32[64,32], index: 6, kind: input, shape index: {}]
  %s7 = inlined_call_operand.vmem [shape: f32[1,32], index: 7, kind: input, shape index: {}]
  %s8 = inlined_call_operand.vmem [shape: f32[32,96], index: 8, kind: input, shape index: {}]
  %s9 = inlined_call_operand.vmem [shape: f32[32,96], index: 9, kind: input, shape index: {}]
  %s10 = inlined_call_operand.vmem [shape: f32[1,96], index: 10, kind: input, shape index: {}]
  %s11 = inlined_call_operand.vmem [shape: f32[1,96], index: 11, kind: input, shape index: {}]
  %s12 = inlined_call_operand.vmem [shape: f32[32,12], index: 12, kind: input, shape index: {}]
  %s13 = inlined_call_operand.vmem [shape: f32[1,12], index: 13, kind: input, shape index: {}]
  %s14 = inlined_call_operand.hbm [shape: f32[1,1,12], index: 14, kind: output, shape index: {0}]
  %s15 = inlined_call_operand.hbm [shape: f32[1,32], index: 15, kind: output, shape index: {1}]
  %s16 = inlined_call_operand.hbm [shape: f32[1,1,8], index: 16, kind: output, shape index: {2}]
  %17 = xla_tuple %s14, %s15, %s16
  %s18 = sld [smem:[#allocation0]]
  $region108: #{tpu_custom_call.1} parent=0
    _
  %s20 = ssub.s32 1, %s18
  %s21 = scalar_select 0, %s20, %s18
  %22 = sst [smem:[#allocation6]] %s0
  $region1: #{tpu_custom_call.1} parent=0
    #allocation7 [shape = 'u8[512]{0}', space=vmem, size = 0x400, scoped, tag = 'output window, operand 0, single buffered']
    #allocation8 [shape = 's32[1]{0}', space=sflag, size = 0x4, scoped, tag = 'scoped memory for tpu_custom_call.1']
    #allocation9 [shape = 'u8[512]{0}', space=vmem, size = 0x400, scoped, tag = 'output window, operand 1, single buffered']
    #allocation10 [shape = 's32[1]{0}', space=sflag, size = 0x4, scoped, tag = 'scoped memory for tpu_custom_call.1']
    #allocation11 [shape = 'u8[512]{0}', space=vmem, size = 0x400, scoped, tag = 'output window, operand 2, single buffered']
    %23 = vsyncpa [#allocation8], 0
    %24 = vsyncpa [#allocation10], 0
    // Predicated region
    $region2: #{tpu_custom_call.1} parent=1 // pred_check
      _
    $region3: #{tpu_custom_call.1} parent=1 // pred_check_branch
      %26 = sbr.rel (0) target = $region5
    $region4: #{tpu_custom_call.1} parent=1 // pred_region
      _
    $region5: #{tpu_custom_call.1} parent=1 // pred_fallthru
      _
    // Predicated region
    $region6: #{tpu_custom_call.1} parent=1 // pred_check
      _
    $region7: #{tpu_custom_call.1} parent=1 // pred_check_branch
      %28 = sbr.rel (0) target = $region9
    $region8: #{tpu_custom_call.1} parent=1 // pred_region
      _
    $region9: #{tpu_custom_call.1} parent=1 // pred_fallthru
      _
    // Predicated region
    $region10: #{tpu_custom_call.1} parent=1 // pred_check
      _
    $region11: #{tpu_custom_call.1} parent=1 // pred_check_branch
      %30 = sbr.rel (0) target = $region13
    $region12: #{tpu_custom_call.1} parent=1 // pred_region
      _
    $region13: #{tpu_custom_call.1} parent=1 // pred_fallthru
      _
    // Predicated region
    $region14: #{tpu_custom_call.1} parent=1 // pred_check
      _
    $region15: #{tpu_custom_call.1} parent=1 // pred_check_branch
      %32 = sbr.rel (0) target = $region17
    $region16: #{tpu_custom_call.1} parent=1 // pred_region
      _
    $region17: #{tpu_custom_call.1} parent=1 // pred_fallthru
      _
    // Predicated region
    $region18: #{tpu_custom_call.1} parent=1 // pred_check
      _
    $region19: #{tpu_custom_call.1} parent=1 // pred_check_branch
      %34 = sbr.rel (0) target = $region21
    $region20: #{tpu_custom_call.1} parent=1 // pred_region
      _
    $region21: #{tpu_custom_call.1} parent=1 // pred_fallthru
      _
    // Predicated region
    $region22: #{tpu_custom_call.1} parent=1 // pred_check
      _
    $region23: #{tpu_custom_call.1} parent=1 // pred_check_branch
      %36 = sbr.rel (0) target = $region25
    $region24: #{tpu_custom_call.1} parent=1 // pred_region
      _
    $region25: #{tpu_custom_call.1} parent=1 // pred_fallthru
      _
    // Predicated region
    $region26: #{tpu_custom_call.1} parent=1 // pred_check
      _
    $region27: #{tpu_custom_call.1} parent=1 // pred_check_branch
      %38 = sbr.rel (0) target = $region29
    $region28: #{tpu_custom_call.1} parent=1 // pred_region
      _
    $region29: #{tpu_custom_call.1} parent=1 // pred_fallthru
      _
    // Predicated region
    $region30: #{tpu_custom_call.1} parent=1 // pred_check
      _
    $region31: #{tpu_custom_call.1} parent=1 // pred_check_branch
      %40 = sbr.rel (0) target = $region33
    $region32: #{tpu_custom_call.1} parent=1 // pred_region
      _
    $region33: #{tpu_custom_call.1} parent=1 // pred_fallthru
      _
    // Predicated region
    $region34: #{tpu_custom_call.1} parent=1 // pred_check
      _
    $region35: #{tpu_custom_call.1} parent=1 // pred_check_branch
      %42 = sbr.rel (0) target = $region37
    $region36: #{tpu_custom_call.1} parent=1 // pred_region
      _
    $region37: #{tpu_custom_call.1} parent=1 // pred_fallthru
      _
    // Predicated region
    $region38: #{tpu_custom_call.1} parent=1 // pred_check
      _
    $region39: #{tpu_custom_call.1} parent=1 // pred_check_branch
      %44 = sbr.rel (0) target = $region41
    $region40: #{tpu_custom_call.1} parent=1 // pred_region
      _
    $region41: #{tpu_custom_call.1} parent=1 // pred_fallthru
      _
    // Predicated region
    $region42: #{tpu_custom_call.1} parent=1 // pred_check
      _
    $region43: #{tpu_custom_call.1} parent=1 // pred_check_branch
      %46 = sbr.rel (0) target = $region45
    $region44: #{tpu_custom_call.1} parent=1 // pred_region
      _
    $region45: #{tpu_custom_call.1} parent=1 // pred_fallthru
      _
    // Predicated region
    $region46: #{tpu_custom_call.1} parent=1 // pred_check
      _
    $region47: #{tpu_custom_call.1} parent=1 // pred_check_branch
      %48 = sbr.rel (0) target = $region49
    $region48: #{tpu_custom_call.1} parent=1 // pred_region
      _
    $region49: #{tpu_custom_call.1} parent=1 // pred_fallthru
      _
    %s49 = sld [smem:[#allocation6]]
    %s50 = scalar_lea.vmem %s1, %s49
    %p52 = scmp.lt.u32.totalorder 1, 8
    %p53 = pneg %p52
    // Predicated region
    $region50: #{tpu_custom_call.1} parent=1 // pred_check
      _
    $region51: #{tpu_custom_call.1} parent=1 // pred_check_branch
      %55 = sbr.rel (%p52) target = $region53
    $region52: #{tpu_custom_call.1} parent=1 // pred_region
      %s70 = sand.u32 1, 7
      %p71 = scmp.eq.s32.totalorder %s70, 0
      %p72 = pneg %p71
      // Predicated region
      $region65: #{tpu_custom_call.1} parent=52 // pred_check
        _
      $region66: #{tpu_custom_call.1} parent=52 // pred_check_branch
        %74 = sbr.rel (%p71) target = $region68
      $region67: #{tpu_custom_call.1} parent=52 // pred_region
        %s75 = sand.u32 1, 7
        %s76 = ssub.s32 1, %s75
        %s77 = scalar_lea.vmem %s50, %s76
        %s78 = ssub.s32 1, %s75
        %s79 = scalar_lea.vmem [#allocation2], %s78
        %s80 = sshllo.u32 0, %s75
        loop: start=0, step=1, limit=1
        $region69: #{tpu_custom_call.1} parent=67 // loop_pre_header
          _
        $region70: #{tpu_custom_call.1} parent=67 // loop_header
          %s82 = sphi 0, %s86
          %p83 = scmp.ge.s32.totalorder %s82, 1
          %s87 = sphi %s77, %s77
          %s88 = sphi %s79, %s79
        $region71: #{tpu_custom_call.1} parent=67 // loop_header_branch
          %85 = sbr.rel (%p83) target = $region75
        $region72: #{tpu_custom_call.1} parent=67 // loop_body
          %v89 = vld [vmem:[%s87] sm:%s80]
          %90 = vst [vmem:[%s88] sm:%s80] %v89
        $region73: #{tpu_custom_call.1} parent=67 // loop_footer
          %s86 = sadd.s32 1, %s82
        $region74: #{tpu_custom_call.1} parent=67 // loop_footer_branch
          %81 = sbr.rel target = $region70
        $region75: #{tpu_custom_call.1} parent=67 // loop_exit
          _
      $region68: #{tpu_custom_call.1} parent=52 // pred_fallthru
        _
    $region53: #{tpu_custom_call.1} parent=1 // pred_fallthru
      _
    // Predicated region
    $region54: #{tpu_custom_call.1} parent=1 // pred_check
      %p56 = pneg %p52
    $region55: #{tpu_custom_call.1} parent=1 // pred_check_branch
      %58 = sbr.rel (%p56) target = $region57
    $region56: #{tpu_custom_call.1} parent=1 // pred_region
      %s59 = sshllo.u32 0, 1
      loop: start=0, step=1, limit=1
      $region58: #{tpu_custom_call.1} parent=56 // loop_pre_header
        _
      $region59: #{tpu_custom_call.1} parent=56 // loop_header
        %s61 = sphi 0, %s65
        %p62 = scmp.ge.s32.totalorder %s61, 1
        %s66 = sphi %s50, %s50
        %s67 = sphi [#allocation2], [#allocation2]
      $region60: #{tpu_custom_call.1} parent=56 // loop_header_branch
        %64 = sbr.rel (%p62) target = $region64
      $region61: #{tpu_custom_call.1} parent=56 // loop_body
        %v68 = vld [vmem:[%s66] sm:%s59]
        %69 = vst [vmem:[%s67] sm:%s59] %v68
      $region62: #{tpu_custom_call.1} parent=56 // loop_footer
        %s65 = sadd.s32 1, %s61
      $region63: #{tpu_custom_call.1} parent=56 // loop_footer_branch
        %60 = sbr.rel target = $region59
      $region64: #{tpu_custom_call.1} parent=56 // loop_exit
        _
    $region57: #{tpu_custom_call.1} parent=1 // pred_fallthru
      _
    // Predicated region
    $region76: #{tpu_custom_call.1} parent=1 // pred_check
      _
    $region77: #{tpu_custom_call.1} parent=1 // pred_check_branch
      %93 = sbr.rel (0) target = $region79
    $region78: #{tpu_custom_call.1} parent=1 // pred_region
      %94 = vsyncadd [#allocation4], 16
    $region79: #{tpu_custom_call.1} parent=1 // pred_fallthru
      _
    %p95 = scmp.eq.s32.totalorder 0, 0
    // Predicated region
    $region80: #{tpu_custom_call.1} parent=1 // pred_check
      %p96 = pneg %p95
    $region81: #{tpu_custom_call.1} parent=1 // pred_check_branch
      %98 = sbr.rel (%p96) target = $region83
    $region82: #{tpu_custom_call.1} parent=1 // pred_region
      %v99 = vld [vmem:[%s2] sm:$0x1]
      %vm100 = vcmask 253952
      %101 = vst.msk [vmem:[#allocation3] sm:$0x1] %vm100, %v99
    $region83: #{tpu_custom_call.1} parent=1 // pred_fallthru
      _
    %v102 = vld [vmem:[#allocation3] sm:$0x1]
    %s103 = smul.u32 1, 1
    %s104 = sshll.u32 %s103, 4
    %105 = dma.done [#allocation4], %s104
    %v106 = vld [vmem:[#allocation2] sm:$0x1]
    %v107 = vld [vmem:[%s4] sm:$0xff]
    %v108 = vld [vmem:[%s4 + $0x8] sm:$0xff]
    %v109 = vld [vmem:[%s4 + $0x10] sm:$0xff]
    %v110 = vld [vmem:[%s4 + $0x18] sm:$0xff]
    %v111 = vld [vmem:[%s4 + $0x20] sm:$0xff]
    %v112 = vld [vmem:[%s4 + $0x28] sm:$0xff]
    %v113 = vld [vmem:[%s4 + $0x30] sm:$0xff]
    %v114 = vld [vmem:[%s4 + $0x38] sm:$0xff]
    %vm115 = vcmask 261120
    %v117 = vsel %vm115, %v102, 0
    %119 = vmatprep.subr.mxu0 0.0
    %120 = vmatpush1.msra.mxu0 %v111
    %121 = vmatprep.subr.mxu0 0.0
    %122 = vmatpush1.msra.mxu0 %v112
    %123 = vmatprep.subr.mxu0 0.0
    %124 = vmatpush1.msra.mxu0 %v113
    %125 = vmatprep.subr.mxu0 0.0
    %126 = vmatpush1.msra.mxu0 %v114
    %127 = vmatprep.subr.mxu0 0.0
    %128 = vmatpush1.msra.mxu0 0.0
    %129 = vmatprep.subr.mxu0 0.0
    %130 = vmatpush1.msra.mxu0 0.0
    %131 = vmatprep.subr.mxu0 0.0
    %132 = vmatpush1.msra.mxu0 0.0
    %133 = vmatprep.subr.mxu0 0.0
    %134 = vmatpush1.msra.mxu0 0.0
    %135 = vmatprep.subr.mxu0 0.0
    %136 = vmatpush1.msra.mxu0 0.0
    %137 = vmatprep.subr.mxu0 0.0
    %138 = vmatpush1.msra.mxu0 0.0
    %139 = vmatprep.subr.mxu0 0.0
    %140 = vmatpush1.msra.mxu0 0.0
    %141 = vmatprep.subr.mxu0 0.0
    %142 = vmatpush1.msra.mxu0 0.0
    %143 = vmatprep.subr.mxu0 0.0
    %144 = vmatpush1.msra.mxu0 0.0
    %145 = vmatprep.subr.mxu0 0.0
    %146 = vmatpush1.msra.mxu0 0.0
    %147 = vmatprep.subr.mxu0 0.0
    %148 = vmatpush1.msra.mxu0 0.0
    %149 = vmatprep.subr.mxu0 0.0
    %150 = vmatpush1.msra.mxu0 0.0
    %151 = vmatprep.subr.mxu0 0.0
    %152 = vmatpush1.msra.mxu0 0.0
    %153 = vmatprep.subr.mxu0 0.0
    %154 = vmatpush1.msra.mxu0 0.0
    %155 = vmatprep.subr.mxu0 0.0
    %156 = vmatpush1.msra.mxu0 0.0
    %157 = vmatprep.subr.mxu0 0.0
    %158 = vmatpush1.msra.mxu0 0.0
    %159 = vmatprep.subr.mxu0 0.0
    %160 = vmatpush1.msra.mxu0 0.0
    %161 = vmatprep.subr.mxu0 0.0
    %162 = vmatpush1.msra.mxu0 0.0
    %163 = vmatprep.subr.mxu0 0.0
    %164 = vmatpush1.msra.mxu0 0.0
    %165 = vmatprep.subr.mxu0 0.0
    %166 = vmatpush1.msra.mxu0 0.0
    %167 = vmatprep.subr.mxu0 0.0
    %168 = vmatpush1.msra.mxu0 0.0
    %169 = vmatprep.subr.mxu0 0.0
    %170 = vmatpush1.msra.mxu0 0.0
    %171 = vmatprep.subr.mxu0 0.0
    %172 = vmatpush1.msra.mxu0 0.0
    %173 = vmatprep.subr.mxu0 0.0
    %174 = vmatpush1.msra.mxu0 0.0
    %175 = vmatprep.subr.mxu0 0.0
    %176 = vmatpush1.msra.mxu0 0.0
    %177 = vmatprep.subr.mxu0 0.0
    %178 = vmatpush1.msra.mxu0 0.0
    %179 = vmatprep.subr.mxu0 0.0
    %180 = vmatpush1.msra.mxu0 0.0
    %181 = vmatprep.subr.mxu0 0.0
    %182 = vmatpush1.msra.mxu0 0.0
    %183 = vmatprep.mubr.f32.mxu0 0.0
    %184 = vmatmul.mubr.f32.gmra.mrb[0].mxu0 %v117
    %v185 = vpop.f32.mrb[0].mxu0
    %v186 = vadd.f32 0.0, %v185
    %v187 = vpop.f32.mrb[0].mxu0
    %188 = vdwg.mxu0
    %v190 = vsel %vm115, %v106, 0
    %192 = vmatprep.subr.mxu0 0.0
    %193 = vmatpush1.msra.mxu0 %v107
    %194 = vmatprep.subr.mxu0 0.0
    %195 = vmatpush1.msra.mxu0 %v108
    %196 = vmatprep.subr.mxu0 0.0
    %197 = vmatpush1.msra.mxu0 %v109
    %198 = vmatprep.subr.mxu0 0.0
    %199 = vmatpush1.msra.mxu0 %v110
    %200 = vmatprep.subr.mxu0 0.0
    %201 = vmatpush1.msra.mxu0 0.0
    %202 = vmatprep.subr.mxu0 0.0
    %203 = vmatpush1.msra.mxu0 0.0
    %204 = vmatprep.subr.mxu0 0.0
    %205 = vmatpush1.msra.mxu0 0.0
    %206 = vmatprep.subr.mxu0 0.0
    %207 = vmatpush1.msra.mxu0 0.0
    %208 = vmatprep.subr.mxu0 0.0
    %209 = vmatpush1.msra.mxu0 0.0
    %210 = vmatprep.subr.mxu0 0.0
    %211 = vmatpush1.msra.mxu0 0.0
    %212 = vmatprep.subr.mxu0 0.0
    %213 = vmatpush1.msra.mxu0 0.0
    %214 = vmatprep.subr.mxu0 0.0
    %215 = vmatpush1.msra.mxu0 0.0
    %216 = vmatprep.subr.mxu0 0.0
    %217 = vmatpush1.msra.mxu0 0.0
    %218 = vmatprep.subr.mxu0 0.0
    %219 = vmatpush1.msra.mxu0 0.0
    %220 = vmatprep.subr.mxu0 0.0
    %221 = vmatpush1.msra.mxu0 0.0
    %222 = vmatprep.subr.mxu0 0.0
    %223 = vmatpush1.msra.mxu0 0.0
    %224 = vmatprep.subr.mxu0 0.0
    %225 = vmatpush1.msra.mxu0 0.0
    %226 = vmatprep.subr.mxu0 0.0
    %227 = vmatpush1.msra.mxu0 0.0
    %228 = vmatprep.subr.mxu0 0.0
    %229 = vmatpush1.msra.mxu0 0.0
    %230 = vmatprep.subr.mxu0 0.0
    %231 = vmatpush1.msra.mxu0 0.0
    %232 = vmatprep.subr.mxu0 0.0
    %233 = vmatpush1.msra.mxu0 0.0
    %234 = vmatprep.subr.mxu0 0.0
    %235 = vmatpush1.msra.mxu0 0.0
    %236 = vmatprep.subr.mxu0 0.0
    %237 = vmatpush1.msra.mxu0 0.0
    %238 = vmatprep.subr.mxu0 0.0
    %239 = vmatpush1.msra.mxu0 0.0
    %240 = vmatprep.subr.mxu0 0.0
    %241 = vmatpush1.msra.mxu0 0.0
    %242 = vmatprep.subr.mxu0 0.0
    %243 = vmatpush1.msra.mxu0 0.0
    %244 = vmatprep.subr.mxu0 0.0
    %245 = vmatpush1.msra.mxu0 0.0
    %246 = vmatprep.subr.mxu0 0.0
    %247 = vmatpush1.msra.mxu0 0.0
    %248 = vmatprep.subr.mxu0 0.0
    %249 = vmatpush1.msra.mxu0 0.0
    %250 = vmatprep.subr.mxu0 0.0
    %251 = vmatpush1.msra.mxu0 0.0
    %252 = vmatprep.subr.mxu0 0.0
    %253 = vmatpush1.msra.mxu0 0.0
    %254 = vmatprep.subr.mxu0 0.0
    %255 = vmatpush1.msra.mxu0 0.0
    %256 = vmatprep.mubr.f32.mxu0 0.0
    %257 = vmatmul.mubr.f32.gmra.mrb[0].mxu0 %v190
    %v258 = vpop.f32.mrb[0].mxu0
    %v259 = vadd.f32 %v186, %v258
    %v260 = vpop.f32.mrb[0].mxu0
    %261 = vdwg.mxu0
    %v262 = vld [vmem:[%s5] sm:$0x1]
    %v263 = vadd.f32 %v259, %v262
    %vm264 = vcmask 57344
    %v265 = vsel %vm264, %v263, -inf
    %266 = vmax.xlane.f32.xlu0 %v265
    %v267 = vpop.xlane.xlu0 %266
    %v268 = vsub.f32 %v263, %v267
    %v269 = vmul.f32 %v268, 1.442695
    %v270 = vpow.pop %v269
    %v271 = vsel %vm264, %v270, 0.0
    %272 = vadd.xlane.f32.xlu0 %v271
    %v273 = vpop.xlane.xlu0 %272
    %v274 = vrcp.pop %v273
    %v275 = vmul.f32 %v270, %v274
    %276 = vst.msk [vmem:[#allocation11] sm:$0x1] %vm264, %v275
    %v277 = vld [vmem:[%s3] sm:$0xff]
    %vm278 = vcmask 64512
    %v280 = vsel %vm278, %v275, 0
    %282 = vmatprep.subr.mxu0 0.0
    %283 = vmatpush1.msra.mxu0 %v277
    %284 = vmatprep.subr.mxu0 0.0
    %285 = vmatpush1.msra.mxu0 0.0
    %286 = vmatprep.subr.mxu0 0.0
    %287 = vmatpush1.msra.mxu0 0.0
    %288 = vmatprep.subr.mxu0 0.0
    %289 = vmatpush1.msra.mxu0 0.0
    %290 = vmatprep.subr.mxu0 0.0
    %291 = vmatpush1.msra.mxu0 0.0
    %292 = vmatprep.subr.mxu0 0.0
    %293 = vmatpush1.msra.mxu0 0.0
    %294 = vmatprep.subr.mxu0 0.0
    %295 = vmatpush1.msra.mxu0 0.0
    %296 = vmatprep.subr.mxu0 0.0
    %297 = vmatpush1.msra.mxu0 0.0
    %298 = vmatprep.subr.mxu0 0.0
    %299 = vmatpush1.msra.mxu0 0.0
    %300 = vmatprep.subr.mxu0 0.0
    %301 = vmatpush1.msra.mxu0 0.0
    %302 = vmatprep.subr.mxu0 0.0
    %303 = vmatpush1.msra.mxu0 0.0
    %304 = vmatprep.subr.mxu0 0.0
    %305 = vmatpush1.msra.mxu0 0.0
    %306 = vmatprep.subr.mxu0 0.0
    %307 = vmatpush1.msra.mxu0 0.0
    %308 = vmatprep.subr.mxu0 0.0
    %309 = vmatpush1.msra.mxu0 0.0
    %310 = vmatprep.subr.mxu0 0.0
    %311 = vmatpush1.msra.mxu0 0.0
    %312 = vmatprep.subr.mxu0 0.0
    %313 = vmatpush1.msra.mxu0 0.0
    %314 = vmatprep.subr.mxu0 0.0
    %315 = vmatpush1.msra.mxu0 0.0
    %316 = vmatprep.subr.mxu0 0.0
    %317 = vmatpush1.msra.mxu0 0.0
    %318 = vmatprep.subr.mxu0 0.0
    %319 = vmatpush1.msra.mxu0 0.0
    %320 = vmatprep.subr.mxu0 0.0
    %321 = vmatpush1.msra.mxu0 0.0
    %322 = vmatprep.subr.mxu0 0.0
    %323 = vmatpush1.msra.mxu0 0.0
    %324 = vmatprep.subr.mxu0 0.0
    %325 = vmatpush1.msra.mxu0 0.0
    %326 = vmatprep.subr.mxu0 0.0
    %327 = vmatpush1.msra.mxu0 0.0
    %328 = vmatprep.subr.mxu0 0.0
    %329 = vmatpush1.msra.mxu0 0.0
    %330 = vmatprep.subr.mxu0 0.0
    %331 = vmatpush1.msra.mxu0 0.0
    %332 = vmatprep.subr.mxu0 0.0
    %333 = vmatpush1.msra.mxu0 0.0
    %334 = vmatprep.subr.mxu0 0.0
    %335 = vmatpush1.msra.mxu0 0.0
    %336 = vmatprep.subr.mxu0 0.0
    %337 = vmatpush1.msra.mxu0 0.0
    %338 = vmatprep.subr.mxu0 0.0
    %339 = vmatpush1.msra.mxu0 0.0
    %340 = vmatprep.subr.mxu0 0.0
    %341 = vmatpush1.msra.mxu0 0.0
    %342 = vmatprep.subr.mxu0 0.0
    %343 = vmatpush1.msra.mxu0 0.0
    %344 = vmatprep.subr.mxu0 0.0
    %345 = vmatpush1.msra.mxu0 0.0
    %346 = vmatprep.mubr.f32.mxu0 0.0
    %347 = vmatmul.mubr.f32.gmra.mrb[0].mxu0 %v280
    %v348 = vpop.f32.mrb[0].mxu0
    %v349 = vadd.f32 0.0, %v348
    %v350 = vpop.f32.mrb[0].mxu0
    %351 = vdwg.mxu0
    %v352 = vld [vmem:[%s6] sm:$0xff]
    %v353 = vld [vmem:[%s6 + $0x8] sm:$0xff]
    %v354 = vld [vmem:[%s6 + $0x10] sm:$0xff]
    %v355 = vld [vmem:[%s6 + $0x18] sm:$0xff]
    %v356 = vld [vmem:[%s6 + $0x20] sm:$0xff]
    %v357 = vld [vmem:[%s6 + $0x28] sm:$0xff]
    %v358 = vld [vmem:[%s6 + $0x30] sm:$0xff]
    %v359 = vld [vmem:[%s6 + $0x38] sm:$0xff]
    %v361 = vsel %vm115, %v349, 0
    %363 = vmatprep.subr.mxu0 0.0
    %364 = vmatpush1.msra.mxu0 %v356
    %365 = vmatprep.subr.mxu0 0.0
    %366 = vmatpush1.msra.mxu0 %v357
    %367 = vmatprep.subr.mxu0 0.0
    %368 = vmatpush1.msra.mxu0 %v358
    %369 = vmatprep.subr.mxu0 0.0
    %370 = vmatpush1.msra.mxu0 %v359
    %371 = vmatprep.subr.mxu0 0.0
    %372 = vmatpush1.msra.mxu0 0.0
    %373 = vmatprep.subr.mxu0 0.0
    %374 = vmatpush1.msra.mxu0 0.0
    %375 = vmatprep.subr.mxu0 0.0
    %376 = vmatpush1.msra.mxu0 0.0
    %377 = vmatprep.subr.mxu0 0.0
    %378 = vmatpush1.msra.mxu0 0.0
    %379 = vmatprep.subr.mxu0 0.0
    %380 = vmatpush1.msra.mxu0 0.0
    %381 = vmatprep.subr.mxu0 0.0
    %382 = vmatpush1.msra.mxu0 0.0
    %383 = vmatprep.subr.mxu0 0.0
    %384 = vmatpush1.msra.mxu0 0.0
    %385 = vmatprep.subr.mxu0 0.0
    %386 = vmatpush1.msra.mxu0 0.0
    %387 = vmatprep.subr.mxu0 0.0
    %388 = vmatpush1.msra.mxu0 0.0
    %389 = vmatprep.subr.mxu0 0.0
    %390 = vmatpush1.msra.mxu0 0.0
    %391 = vmatprep.subr.mxu0 0.0
    %392 = vmatpush1.msra.mxu0 0.0
    %393 = vmatprep.subr.mxu0 0.0
    %394 = vmatpush1.msra.mxu0 0.0
    %395 = vmatprep.subr.mxu0 0.0
    %396 = vmatpush1.msra.mxu0 0.0
    %397 = vmatprep.subr.mxu0 0.0
    %398 = vmatpush1.msra.mxu0 0.0
    %399 = vmatprep.subr.mxu0 0.0
    %400 = vmatpush1.msra.mxu0 0.0
    %401 = vmatprep.subr.mxu0 0.0
    %402 = vmatpush1.msra.mxu0 0.0
    %403 = vmatprep.subr.mxu0 0.0
    %404 = vmatpush1.msra.mxu0 0.0
    %405 = vmatprep.subr.mxu0 0.0
    %406 = vmatpush1.msra.mxu0 0.0
    %407 = vmatprep.subr.mxu0 0.0
    %408 = vmatpush1.msra.mxu0 0.0
    %409 = vmatprep.subr.mxu0 0.0
    %410 = vmatpush1.msra.mxu0 0.0
    %411 = vmatprep.subr.mxu0 0.0
    %412 = vmatpush1.msra.mxu0 0.0
    %413 = vmatprep.subr.mxu0 0.0
    %414 = vmatpush1.msra.mxu0 0.0
    %415 = vmatprep.subr.mxu0 0.0
    %416 = vmatpush1.msra.mxu0 0.0
    %417 = vmatprep.subr.mxu0 0.0
    %418 = vmatpush1.msra.mxu0 0.0
    %419 = vmatprep.subr.mxu0 0.0
    %420 = vmatpush1.msra.mxu0 0.0
    %421 = vmatprep.subr.mxu0 0.0
    %422 = vmatpush1.msra.mxu0 0.0
    %423 = vmatprep.subr.mxu0 0.0
    %424 = vmatpush1.msra.mxu0 0.0
    %425 = vmatprep.subr.mxu0 0.0
    %426 = vmatpush1.msra.mxu0 0.0
    %427 = vmatprep.mubr.f32.mxu0 0.0
    %428 = vmatmul.mubr.f32.gmra.mrb[0].mxu0 %v361
    %v429 = vpop.f32.mrb[0].mxu0
    %v430 = vadd.f32 0.0, %v429
    %v431 = vpop.f32.mrb[0].mxu0
    %432 = vdwg.mxu0
    %433 = vmatprep.subr.mxu0 0.0
    %434 = vmatpush1.msra.mxu0 %v352
    %435 = vmatprep.subr.mxu0 0.0
    %436 = vmatpush1.msra.mxu0 %v353
    %437 = vmatprep.subr.mxu0 0.0
    %438 = vmatpush1.msra.mxu0 %v354
    %439 = vmatprep.subr.mxu0 0.0
    %440 = vmatpush1.msra.mxu0 %v355
    %441 = vmatprep.subr.mxu0 0.0
    %442 = vmatpush1.msra.mxu0 0.0
    %443 = vmatprep.subr.mxu0 0.0
    %444 = vmatpush1.msra.mxu0 0.0
    %445 = vmatprep.subr.mxu0 0.0
    %446 = vmatpush1.msra.mxu0 0.0
    %447 = vmatprep.subr.mxu0 0.0
    %448 = vmatpush1.msra.mxu0 0.0
    %449 = vmatprep.subr.mxu0 0.0
    %450 = vmatpush1.msra.mxu0 0.0
    %451 = vmatprep.subr.mxu0 0.0
    %452 = vmatpush1.msra.mxu0 0.0
    %453 = vmatprep.subr.mxu0 0.0
    %454 = vmatpush1.msra.mxu0 0.0
    %455 = vmatprep.subr.mxu0 0.0
    %456 = vmatpush1.msra.mxu0 0.0
    %457 = vmatprep.subr.mxu0 0.0
    %458 = vmatpush1.msra.mxu0 0.0
    %459 = vmatprep.subr.mxu0 0.0
    %460 = vmatpush1.msra.mxu0 0.0
    %461 = vmatprep.subr.mxu0 0.0
    %462 = vmatpush1.msra.mxu0 0.0
    %463 = vmatprep.subr.mxu0 0.0
    %464 = vmatpush1.msra.mxu0 0.0
    %465 = vmatprep.subr.mxu0 0.0
    %466 = vmatpush1.msra.mxu0 0.0
    %467 = vmatprep.subr.mxu0 0.0
    %468 = vmatpush1.msra.mxu0 0.0
    %469 = vmatprep.subr.mxu0 0.0
    %470 = vmatpush1.msra.mxu0 0.0
    %471 = vmatprep.subr.mxu0 0.0
    %472 = vmatpush1.msra.mxu0 0.0
    %473 = vmatprep.subr.mxu0 0.0
    %474 = vmatpush1.msra.mxu0 0.0
    %475 = vmatprep.subr.mxu0 0.0
    %476 = vmatpush1.msra.mxu0 0.0
    %477 = vmatprep.subr.mxu0 0.0
    %478 = vmatpush1.msra.mxu0 0.0
    %479 = vmatprep.subr.mxu0 0.0
    %480 = vmatpush1.msra.mxu0 0.0
    %481 = vmatprep.subr.mxu0 0.0
    %482 = vmatpush1.msra.mxu0 0.0
    %483 = vmatprep.subr.mxu0 0.0
    %484 = vmatpush1.msra.mxu0 0.0
    %485 = vmatprep.subr.mxu0 0.0
    %486 = vmatpush1.msra.mxu0 0.0
    %487 = vmatprep.subr.mxu0 0.0
    %488 = vmatpush1.msra.mxu0 0.0
    %489 = vmatprep.subr.mxu0 0.0
    %490 = vmatpush1.msra.mxu0 0.0
    %491 = vmatprep.subr.mxu0 0.0
    %492 = vmatpush1.msra.mxu0 0.0
    %493 = vmatprep.subr.mxu0 0.0
    %494 = vmatpush1.msra.mxu0 0.0
    %495 = vmatprep.subr.mxu0 0.0
    %496 = vmatpush1.msra.mxu0 0.0
    %497 = vmatprep.mubr.f32.mxu0 0.0
    %498 = vmatmul.mubr.f32.gmra.mrb[0].mxu0 %v190
    %v499 = vpop.f32.mrb[0].mxu0
    %v500 = vadd.f32 %v430, %v499
    %v501 = vpop.f32.mrb[0].mxu0
    %502 = vdwg.mxu0
    %v503 = vld [vmem:[%s7] sm:$0x1]
    %v504 = vadd.f32 %v500, %v503
    %v505 = vmax.f32 %v504, 0.0
    %v506 = vld [vmem:[%s8] sm:$0xff]
    %v507 = vld [vmem:[%s8 + $0x8] sm:$0xff]
    %v508 = vld [vmem:[%s8 + $0x10] sm:$0xff]
    %v509 = vld [vmem:[%s8 + $0x18] sm:$0xff]
    %v510 = vld [vmem:[%s10] sm:$0x1]
    %v512 = vsel %vm115, %v505, 0
    %514 = vmatprep.subr.mxu0 0.0
    %515 = vmatpush1.msra.mxu0 %v506
    %516 = vmatprep.subr.mxu0 0.0
    %517 = vmatpush1.msra.mxu0 %v507
    %518 = vmatprep.subr.mxu0 0.0
    %519 = vmatpush1.msra.mxu0 %v508
    %520 = vmatprep.subr.mxu0 0.0
    %521 = vmatpush1.msra.mxu0 %v509
    %522 = vmatprep.subr.mxu0 0.0
    %523 = vmatpush1.msra.mxu0 0.0
    %524 = vmatprep.subr.mxu0 0.0
    %525 = vmatpush1.msra.mxu0 0.0
    %526 = vmatprep.subr.mxu0 0.0
    %527 = vmatpush1.msra.mxu0 0.0
    %528 = vmatprep.subr.mxu0 0.0
    %529 = vmatpush1.msra.mxu0 0.0
    %530 = vmatprep.subr.mxu0 0.0
    %531 = vmatpush1.msra.mxu0 0.0
    %532 = vmatprep.subr.mxu0 0.0
    %533 = vmatpush1.msra.mxu0 0.0
    %534 = vmatprep.subr.mxu0 0.0
    %535 = vmatpush1.msra.mxu0 0.0
    %536 = vmatprep.subr.mxu0 0.0
    %537 = vmatpush1.msra.mxu0 0.0
    %538 = vmatprep.subr.mxu0 0.0
    %539 = vmatpush1.msra.mxu0 0.0
    %540 = vmatprep.subr.mxu0 0.0
    %541 = vmatpush1.msra.mxu0 0.0
    %542 = vmatprep.subr.mxu0 0.0
    %543 = vmatpush1.msra.mxu0 0.0
    %544 = vmatprep.subr.mxu0 0.0
    %545 = vmatpush1.msra.mxu0 0.0
    %546 = vmatprep.subr.mxu0 0.0
    %547 = vmatpush1.msra.mxu0 0.0
    %548 = vmatprep.subr.mxu0 0.0
    %549 = vmatpush1.msra.mxu0 0.0
    %550 = vmatprep.subr.mxu0 0.0
    %551 = vmatpush1.msra.mxu0 0.0
    %552 = vmatprep.subr.mxu0 0.0
    %553 = vmatpush1.msra.mxu0 0.0
    %554 = vmatprep.subr.mxu0 0.0
    %555 = vmatpush1.msra.mxu0 0.0
    %556 = vmatprep.subr.mxu0 0.0
    %557 = vmatpush1.msra.mxu0 0.0
    %558 = vmatprep.subr.mxu0 0.0
    %559 = vmatpush1.msra.mxu0 0.0
    %560 = vmatprep.subr.mxu0 0.0
    %561 = vmatpush1.msra.mxu0 0.0
    %562 = vmatprep.subr.mxu0 0.0
    %563 = vmatpush1.msra.mxu0 0.0
    %564 = vmatprep.subr.mxu0 0.0
    %565 = vmatpush1.msra.mxu0 0.0
    %566 = vmatprep.subr.mxu0 0.0
    %567 = vmatpush1.msra.mxu0 0.0
    %568 = vmatprep.subr.mxu0 0.0
    %569 = vmatpush1.msra.mxu0 0.0
    %570 = vmatprep.subr.mxu0 0.0
    %571 = vmatpush1.msra.mxu0 0.0
    %572 = vmatprep.subr.mxu0 0.0
    %573 = vmatpush1.msra.mxu0 0.0
    %574 = vmatprep.subr.mxu0 0.0
    %575 = vmatpush1.msra.mxu0 0.0
    %576 = vmatprep.subr.mxu0 0.0
    %577 = vmatpush1.msra.mxu0 0.0
    %578 = vmatprep.mubr.f32.mxu0 0.0
    %579 = vmatmul.mubr.f32.gmra.mrb[0].mxu0 %v512
    %v580 = vpop.f32.mrb[0].mxu0
    %v581 = vadd.f32 %v510, %v580
    %v582 = vpop.f32.mrb[0].mxu0
    %583 = vdwg.mxu0
    %v584 = vld [vmem:[%s9] sm:$0xff]
    %v585 = vld [vmem:[%s9 + $0x8] sm:$0xff]
    %v586 = vld [vmem:[%s9 + $0x10] sm:$0xff]
    %v587 = vld [vmem:[%s9 + $0x18] sm:$0xff]
    %v588 = vld [vmem:[%s11] sm:$0x1]
    %589 = vmatprep.subr.mxu0 0.0
    %590 = vmatpush1.msra.mxu0 %v584
    %591 = vmatprep.subr.mxu0 0.0
    %592 = vmatpush1.msra.mxu0 %v585
    %593 = vmatprep.subr.mxu0 0.0
    %594 = vmatpush1.msra.mxu0 %v586
    %595 = vmatprep.subr.mxu0 0.0
    %596 = vmatpush1.msra.mxu0 %v587
    %597 = vmatprep.subr.mxu0 0.0
    %598 = vmatpush1.msra.mxu0 0.0
    %599 = vmatprep.subr.mxu0 0.0
    %600 = vmatpush1.msra.mxu0 0.0
    %601 = vmatprep.subr.mxu0 0.0
    %602 = vmatpush1.msra.mxu0 0.0
    %603 = vmatprep.subr.mxu0 0.0
    %604 = vmatpush1.msra.mxu0 0.0
    %605 = vmatprep.subr.mxu0 0.0
    %606 = vmatpush1.msra.mxu0 0.0
    %607 = vmatprep.subr.mxu0 0.0
    %608 = vmatpush1.msra.mxu0 0.0
    %609 = vmatprep.subr.mxu0 0.0
    %610 = vmatpush1.msra.mxu0 0.0
    %611 = vmatprep.subr.mxu0 0.0
    %612 = vmatpush1.msra.mxu0 0.0
    %613 = vmatprep.subr.mxu0 0.0
    %614 = vmatpush1.msra.mxu0 0.0
    %615 = vmatprep.subr.mxu0 0.0
    %616 = vmatpush1.msra.mxu0 0.0
    %617 = vmatprep.subr.mxu0 0.0
    %618 = vmatpush1.msra.mxu0 0.0
    %619 = vmatprep.subr.mxu0 0.0
    %620 = vmatpush1.msra.mxu0 0.0
    %621 = vmatprep.subr.mxu0 0.0
    %622 = vmatpush1.msra.mxu0 0.0
    %623 = vmatprep.subr.mxu0 0.0
    %624 = vmatpush1.msra.mxu0 0.0
    %625 = vmatprep.subr.mxu0 0.0
    %626 = vmatpush1.msra.mxu0 0.0
    %627 = vmatprep.subr.mxu0 0.0
    %628 = vmatpush1.msra.mxu0 0.0
    %629 = vmatprep.subr.mxu0 0.0
    %630 = vmatpush1.msra.mxu0 0.0
    %631 = vmatprep.subr.mxu0 0.0
    %632 = vmatpush1.msra.mxu0 0.0
    %633 = vmatprep.subr.mxu0 0.0
    %634 = vmatpush1.msra.mxu0 0.0
    %635 = vmatprep.subr.mxu0 0.0
    %636 = vmatpush1.msra.mxu0 0.0
    %637 = vmatprep.subr.mxu0 0.0
    %638 = vmatpush1.msra.mxu0 0.0
    %639 = vmatprep.subr.mxu0 0.0
    %640 = vmatpush1.msra.mxu0 0.0
    %641 = vmatprep.subr.mxu0 0.0
    %642 = vmatpush1.msra.mxu0 0.0
    %643 = vmatprep.subr.mxu0 0.0
    %644 = vmatpush1.msra.mxu0 0.0
    %645 = vmatprep.subr.mxu0 0.0
    %646 = vmatpush1.msra.mxu0 0.0
    %647 = vmatprep.subr.mxu0 0.0
    %648 = vmatpush1.msra.mxu0 0.0
    %649 = vmatprep.subr.mxu0 0.0
    %650 = vmatpush1.msra.mxu0 0.0
    %651 = vmatprep.subr.mxu0 0.0
    %652 = vmatpush1.msra.mxu0 0.0
    %653 = vmatprep.mubr.f32.mxu0 0.0
    %654 = vmatmul.mubr.f32.gmra.mrb[0].mxu0 %v117
    %v655 = vpop.f32.mrb[0].mxu0
    %v656 = vadd.f32 %v588, %v655
    %v657 = vpop.f32.mrb[0].mxu0
    %658 = vdwg.mxu0
    %v659 = vadd.f32 %v581, %v656
    %v660 = vxor.u32 %v659, 2147483648
    %v661 = vmul.f32 %v660, 1.442695
    %v662 = vpow.pop %v661
    %v663 = vadd.f32 %v662, 1.0
    %v664 = vrcp.pop %v663
    %v665 = vmul.f32 1.0, %v664
    %667 = vrot.lane.b32.xlu0 %v656, 64
    %v668 = vpop.permute.xlu0 %667
    %v670 = vmul.f32 %v665, %v668
    %672 = vrot.lane.b32.xlu0 %v670, 64
    %v673 = vpop.permute.xlu0 %672
    %v675 = vadd.f32 %v581, %v673
    %v676 = vtanh.pop %v675
    %v677 = vsub.f32 1.0, %v665
    %679 = vrot.lane.b32.xlu0 %v676, 96
    %v680 = vpop.permute.xlu0 %679
    %v682 = vmul.f32 %v677, %v680
    %v683 = vlaneseq
    %v684 = vshrl.u32 %v683, 7
    %v685 = vsub.s32 0, %v684
    %v686 = vrot.slane %v102, %v685
    %687 = vrot.lane.b32.xlu0 %v686, 32
    %v688 = vpop.permute.xlu0 %687
    %v690 = vmul.f32 %v665, %v688
    %v691 = vadd.f32 %v682, %v690
    %693 = vrot.lane.b32.xlu0 %v691, 96
    %v694 = vpop.permute.xlu0 %693
    %vm696 = vcmask 253952
    %697 = vst.msk [vmem:[#allocation3] sm:$0x1] %vm696, %v694
    %698 = vst.msk [vmem:[#allocation9] sm:$0x1] %vm696, %v694
    %v699 = vld [vmem:[%s12] sm:$0xff]
    %v700 = vld [vmem:[%s12 + $0x8] sm:$0xff]
    %v701 = vld [vmem:[%s12 + $0x10] sm:$0xff]
    %v702 = vld [vmem:[%s12 + $0x18] sm:$0xff]
    %v703 = vld [vmem:[%s13] sm:$0x1]
    %v704 = vsel %vm115, %v694, 0
    %706 = vmatprep.subr.mxu0 0.0
    %707 = vmatpush1.msra.mxu0 %v699
    %708 = vmatprep.subr.mxu0 0.0
    %709 = vmatpush1.msra.mxu0 %v700
    %710 = vmatprep.subr.mxu0 0.0
    %711 = vmatpush1.msra.mxu0 %v701
    %712 = vmatprep.subr.mxu0 0.0
    %713 = vmatpush1.msra.mxu0 %v702
    %714 = vmatprep.subr.mxu0 0.0
    %715 = vmatpush1.msra.mxu0 0.0
    %716 = vmatprep.subr.mxu0 0.0
    %717 = vmatpush1.msra.mxu0 0.0
    %718 = vmatprep.subr.mxu0 0.0
    %719 = vmatpush1.msra.mxu0 0.0
    %720 = vmatprep.subr.mxu0 0.0
    %721 = vmatpush1.msra.mxu0 0.0
    %722 = vmatprep.subr.mxu0 0.0
    %723 = vmatpush1.msra.mxu0 0.0
    %724 = vmatprep.subr.mxu0 0.0
    %725 = vmatpush1.msra.mxu0 0.0
    %726 = vmatprep.subr.mxu0 0.0
    %727 = vmatpush1.msra.mxu0 0.0
    %728 = vmatprep.subr.mxu0 0.0
    %729 = vmatpush1.msra.mxu0 0.0
    %730 = vmatprep.subr.mxu0 0.0
    %731 = vmatpush1.msra.mxu0 0.0
    %732 = vmatprep.subr.mxu0 0.0
    %733 = vmatpush1.msra.mxu0 0.0
    %734 = vmatprep.subr.mxu0 0.0
    %735 = vmatpush1.msra.mxu0 0.0
    %736 = vmatprep.subr.mxu0 0.0
    %737 = vmatpush1.msra.mxu0 0.0
    %738 = vmatprep.subr.mxu0 0.0
    %739 = vmatpush1.msra.mxu0 0.0
    %740 = vmatprep.subr.mxu0 0.0
    %741 = vmatpush1.msra.mxu0 0.0
    %742 = vmatprep.subr.mxu0 0.0
    %743 = vmatpush1.msra.mxu0 0.0
    %744 = vmatprep.subr.mxu0 0.0
    %745 = vmatpush1.msra.mxu0 0.0
    %746 = vmatprep.subr.mxu0 0.0
    %747 = vmatpush1.msra.mxu0 0.0
    %748 = vmatprep.subr.mxu0 0.0
    %749 = vmatpush1.msra.mxu0 0.0
    %750 = vmatprep.subr.mxu0 0.0
    %751 = vmatpush1.msra.mxu0 0.0
    %752 = vmatprep.subr.mxu0 0.0
    %753 = vmatpush1.msra.mxu0 0.0
    %754 = vmatprep.subr.mxu0 0.0
    %755 = vmatpush1.msra.mxu0 0.0
    %756 = vmatprep.subr.mxu0 0.0
    %757 = vmatpush1.msra.mxu0 0.0
    %758 = vmatprep.subr.mxu0 0.0
    %759 = vmatpush1.msra.mxu0 0.0
    %760 = vmatprep.subr.mxu0 0.0
    %761 = vmatpush1.msra.mxu0 0.0
    %762 = vmatprep.subr.mxu0 0.0
    %763 = vmatpush1.msra.mxu0 0.0
    %764 = vmatprep.subr.mxu0 0.0
    %765 = vmatpush1.msra.mxu0 0.0
    %766 = vmatprep.subr.mxu0 0.0
    %767 = vmatpush1.msra.mxu0 0.0
    %768 = vmatprep.subr.mxu0 0.0
    %769 = vmatpush1.msra.mxu0 0.0
    %770 = vmatprep.mubr.f32.mxu0 0.0
    %771 = vmatmul.mubr.f32.gmra.mrb[0].mxu0 %v704
    %v772 = vpop.f32.mrb[0].mxu0
    %v773 = vadd.f32 %v703, %v772
    %v774 = vpop.f32.mrb[0].mxu0
    %775 = vdwg.mxu0
    %vm776 = vcmask 90112
    %v777 = vsel %vm776, %v773, -inf
    %778 = vmax.xlane.f32.xlu0 %v777
    %v779 = vpop.xlane.xlu0 %778
    %v780 = vsub.f32 %v773, %v779
    %v781 = vmul.f32 %v780, 1.442695
    %v782 = vpow.pop %v781
    %v783 = vsel %vm776, %v782, 0.0
    %784 = vadd.xlane.f32.xlu0 %v783
    %v785 = vpop.xlane.xlu0 %784
    %v786 = vlog2.pop %v785
    %v787 = vmul.f32 %v786, 0.6931472
    %v788 = vadd.f32 %v787, %v779
    %v789 = vsub.f32 %v773, %v788
    %790 = vst.msk [vmem:[#allocation7] sm:$0x1] %vm776, %v789
    // Predicated region
    $region84: #{tpu_custom_call.1} parent=1 // pred_check
      _
    $region85: #{tpu_custom_call.1} parent=1 // pred_check_branch
      %792 = sbr.rel (0) target = $region87
    $region86: #{tpu_custom_call.1} parent=1 // pred_region
      %s794 = ssub.s32 16, 16
      %795 = vsyncadd [#allocation8], %s794
      %s797 = sshll.u32 [#allocation7], 4
      %s798 = int_to_ptr.vmem [resolvable:$true] %s797
      %800 = dma.vmem_to_hbm [thread:$0]  %s798, 16, %s14, [#allocation8]
    $region87: #{tpu_custom_call.1} parent=1 // pred_fallthru
      _
    // Predicated region
    $region88: #{tpu_custom_call.1} parent=1 // pred_check
      _
    $region89: #{tpu_custom_call.1} parent=1 // pred_check_branch
      %802 = sbr.rel (0) target = $region91
    $region90: #{tpu_custom_call.1} parent=1 // pred_region
      %s804 = ssub.s32 16, 16
      %805 = vsyncadd [#allocation10], %s804
      %s807 = sshll.u32 [#allocation9], 4
      %s808 = int_to_ptr.vmem [resolvable:$true] %s807
      %810 = dma.vmem_to_hbm [thread:$0]  %s808, 16, %s15, [#allocation10]
    $region91: #{tpu_custom_call.1} parent=1 // pred_fallthru
      _
    // Predicated region
    $region92: #{tpu_custom_call.1} parent=1 // pred_check
      _
    $region93: #{tpu_custom_call.1} parent=1 // pred_check_branch
      %812 = sbr.rel (0) target = $region95
    $region94: #{tpu_custom_call.1} parent=1 // pred_region
      %s814 = ssub.s32 16, 16
      %815 = vsyncadd [#allocation10], %s814
      %s817 = sshll.u32 [#allocation11], 4
      %s818 = int_to_ptr.vmem [resolvable:$true] %s817
      %820 = dma.vmem_to_hbm [thread:$0]  %s818, 16, %s16, [#allocation10]
    $region95: #{tpu_custom_call.1} parent=1 // pred_fallthru
      _
    // Predicated region
    $region96: #{tpu_custom_call.1} parent=1 // pred_check
      _
    $region97: #{tpu_custom_call.1} parent=1 // pred_check_branch
      %822 = sbr.rel (0) target = $region99
    $region98: #{tpu_custom_call.1} parent=1 // pred_region
      %823 = dma.done [#allocation8], 16
    $region99: #{tpu_custom_call.1} parent=1 // pred_fallthru
      _
    // Predicated region
    $region100: #{tpu_custom_call.1} parent=1 // pred_check
      _
    $region101: #{tpu_custom_call.1} parent=1 // pred_check_branch
      %825 = sbr.rel (0) target = $region103
    $region102: #{tpu_custom_call.1} parent=1 // pred_region
      %826 = dma.done [#allocation10], 16
    $region103: #{tpu_custom_call.1} parent=1 // pred_fallthru
      _
    // Predicated region
    $region104: #{tpu_custom_call.1} parent=1 // pred_check
      _
    $region105: #{tpu_custom_call.1} parent=1 // pred_check_branch
      %828 = sbr.rel (0) target = $region107
    $region106: #{tpu_custom_call.1} parent=1 // pred_region
      %829 = dma.done [#allocation10], 16
    $region107: #{tpu_custom_call.1} parent=1 // pred_fallthru
      _
    %830 = vsyncpa [#allocation8], 1
    %831 = vsyncpa [#allocation10], 1
  %832 = vsyncmov [#allocation4]
  %s833 = vpop.sfrf %832
  %p834 = scmp.eq.s32.totalorder %s833, 0
  %p835 = pneg %p834
  %837 = shalt.err (%p835)

</llo_original>
